<compile_context>
chip_gen: v6e
topology: v6e:2x2x1
jax: 0.10.0
libtpu: 0.0.40
codegen_flags: <defaults>
</compile_context>

<pallas_src>
import jax
import jax.numpy as jnp
from jax.experimental import pallas as pl
from jax.experimental.pallas import tpu as pltpu


def _abs_pos_emb_kernel(emb_t_ref, q_ref, out_ref):
    # emb_t_ref: (D, J)  resident positional table (transposed)
    # q_ref:     (TM, D) row tile of flattened queries
    # out_ref:   (TM, J) row tile of logits
    out_ref[...] = jnp.dot(
        q_ref[...], emb_t_ref[...], preferred_element_type=jnp.float32
    ).astype(out_ref.dtype)


def _tile_rows(rows, bytes_per_row, target_bytes=1536 * 1024, max_tm=8192):
    """Bandwidth-targeted row tile.

    Sizes TM so each grid step moves ~target_bytes of HBM traffic (read + write),
    amortizing the ~0.35 us per-grid-step overhead.  Grid is cdiv-based; small
    odd grids are bumped to an even step count for v7x megacore balance.
    """
    tm = int(target_bytes // max(bytes_per_row, 1))
    tm = max(8, min(tm, max_tm, rows))
    tm -= tm % 8                      # sublane multiple
    tm = max(tm, 8)
    grid = pl.cdiv(rows, tm)
    # v7x has 2 TensorCores; with a small odd grid one TC gets 50% more work.
    if 1 < grid < 8 and grid % 2 == 1:
        grid += 1
        tm = pl.cdiv(rows, grid)
        tm += (-tm) % 8               # round up to sublane multiple
        grid = pl.cdiv(rows, tm)
    return tm, grid


def abs_pos_emb(q, height, width, out_dtype=None):
    """q: (B, H, I, D); height, width: (F, D). Returns (B, H, I, F*F).

    out_dtype defaults to q.dtype (PyTorch parity).  Pass jnp.bfloat16 if the
    consumer tolerates bf16 logits -- writeback bytes dominate this kernel.
    """
    B, H, I, D = q.shape
    F, Dh = height.shape
    assert Dh == D and width.shape == (F, D)
    J = F * F
    out_dtype = q.dtype if out_dtype is None else jnp.dtype(out_dtype)

    # Hoist the positional table out of the kernel: (D, J), computed once.
    emb_t = (height[:, None, :] + width[None, :, :]).reshape(J, D).T
    emb_t = emb_t.astype(q.dtype)

    rows = B * H * I
    q_flat = q.reshape(rows, D)

    q_bytes = jnp.dtype(q.dtype).itemsize
    o_bytes = jnp.dtype(out_dtype).itemsize
    bytes_per_row = D * q_bytes + J * o_bytes
    tm, grid_rows = _tile_rows(rows, bytes_per_row)

    cost = pl.CostEstimate(
        flops=2 * rows * D * J,
        transcendentals=0,
        bytes_accessed=rows * D * q_bytes + rows * J * o_bytes + D * J * q_bytes,
    )

    out = pl.pallas_call(
        _abs_pos_emb_kernel,
        out_shape=jax.ShapeDtypeStruct((rows, J), out_dtype),
        grid_spec=pltpu.PrefetchScalarGridSpec(
            num_scalar_prefetch=0,
            grid=(grid_rows,),
            in_specs=[
                pl.BlockSpec((D, J), lambda i: (0, 0)),    # emb^T, VMEM-resident
                pl.BlockSpec((tm, D), lambda i: (i, 0)),   # q row tile
            ],
            out_specs=pl.BlockSpec((tm, J), lambda i: (i, 0)),
        ),
        compiler_params=pltpu.CompilerParams(
            dimension_semantics=("parallel",),
        ),
        cost_estimate=cost,
    )(emb_t, q_flat)

    return out.reshape(B, H, I, J)


def abs_pos_emb_ref(q, height, width):
    emb = (height[:, None, :] + width[None, :, :]).reshape(-1, height.shape[-1])
    return jnp.einsum('bhid,jd->bhij', q, emb)


if __name__ == "__main__":
    key = jax.random.PRNGKey(0)
    k1, k2, k3 = jax.random.split(key, 3)

    # Small, module-consistent shapes.
    fmap_size = 8
    dim_head = 32
    B, H = 2, 4
    I = fmap_size * fmap_size  # query positions = spatial positions

    scale = dim_head ** (-0.5)
    height = jax.random.normal(k1, (fmap_size, dim_head), dtype=jnp.float32) * scale
    width = jax.random.normal(k2, (fmap_size, dim_head), dtype=jnp.float32) * scale
    q = jax.random.normal(k3, (B, H, I, dim_head), dtype=jnp.float32)

    out = abs_pos_emb(q, height, width)
    out = jax.block_until_ready(out)

    ref = abs_pos_emb_ref(q, height, width)
    assert out.shape == (B, H, I, fmap_size * fmap_size)
    assert out.dtype == q.dtype
    assert jnp.allclose(out, ref, atol=1e-5, rtol=1e-5)

    # Exercise the ragged / multi-step grid path with an awkward row count.
    B2, H2, I2 = 3, 5, 60   # rows = 900, not a multiple of common tile sizes
    q2 = jax.random.normal(jax.random.PRNGKey(1), (B2, H2, I2, dim_head),
                           dtype=jnp.float32)
    out2 = jax.block_until_ready(abs_pos_emb(q2, height, width))
    ref2 = abs_pos_emb_ref(q2, height, width)
    assert jnp.allclose(out2, ref2, atol=1e-5, rtol=1e-5)

    print("KERNEL_OK")
</pallas_src>

<mosaic_0001>
module attributes {stable_mosaic.version = 11 : i64} {
  func.func @_abs_pos_emb_kernel(%arg0: i32, %arg1: memref<32x64xf32, #tpu.memory_space<vmem>>, %arg2: memref<512x32xf32, #tpu.memory_space<vmem>>, %arg3: memref<512x64xf32, #tpu.memory_space<vmem>>) attributes {dimension_semantics = [#tpu.dimension_semantics<parallel>], iteration_bounds = array<i64: 1>, scalar_prefetch = 0 : i64, scratch_operands = 0 : i64, tpu.core_type = #tpu.core_type<tc>, window_params = [{pipeline_mode = #tpu.pipeline_mode<synchronous>, transform_indices = @transform_0, window_bounds = array<i64: 32, 64>}, {transform_indices = @transform_1, window_bounds = array<i64: 512, 32>}, {transform_indices = @transform_2, window_bounds = array<i64: 512, 64>}]} {
    %c0 = arith.constant 0 : index
    %c0_0 = arith.constant 0 : index
    %0 = vector.load %arg2[%c0, %c0_0] : memref<512x32xf32, #tpu.memory_space<vmem>>, vector<512x32xf32>
    %c0_1 = arith.constant 0 : index
    %c0_2 = arith.constant 0 : index
    %1 = vector.load %arg1[%c0_1, %c0_2] : memref<32x64xf32, #tpu.memory_space<vmem>>, vector<32x64xf32>
    %cst = arith.constant dense<0.000000e+00> : vector<512x64xf32>
    %2 = tpu.matmul %0, %1, %cst {dimension_numbers = #tpu.dot_dimension_numbers<[1], [0], [0], [1], [0, 0, 1, 1], [], []>} : vector<512x32xf32>, vector<32x64xf32>, vector<512x64xf32> -> vector<512x64xf32>
    %c0_3 = arith.constant 0 : index
    %c0_4 = arith.constant 0 : index
    %3 = vector.load %arg3[%c0_3, %c0_4] : memref<512x64xf32, #tpu.memory_space<vmem>>, vector<512x64xf32>
    tpu.vector_store %arg3[%c0_3, %c0_4], %2 {strides = array<i32>} : memref<512x64xf32, #tpu.memory_space<vmem>>, vector<512x64xf32>,
    return
  }
  func.func @transform_0(%arg0: i32) -> (i32, i32) {
    %c0_i32 = arith.constant 0 : i32
    %c0_i32_0 = arith.constant 0 : i32
    %c0_i32_1 = arith.constant 0 : i32
    return %c0_i32, %c0_i32_0 : i32, i32
  }
  func.func @transform_1(%arg0: i32) -> (i32, i32) {
    %c0_i32 = arith.constant 0 : i32
    %c0_i32_0 = arith.constant 0 : i32
    return %arg0, %c0_i32 : i32, i32
  }
  func.func @transform_2(%arg0: i32) -> (i32, i32) {
    %c0_i32 = arith.constant 0 : i32
    %c0_i32_0 = arith.constant 0 : i32
    return %arg0, %c0_i32 : i32, i32
  }
}

</mosaic_0001>

<llo_original>
// kernel: tpu_custom_call.1
$region0: #{tpu_custom_call.1}
  #allocation0 [shape = 'u32[]', space=smem, size = 0x4, offset = 0x4, fixed_abs, tag = 'smem constant byte address 0x4 - core index']
  #allocation1 [shape = 'u32[144,128]{1,0:T(1,128)}', space=vmem, size = 0x12000, scoped, tag = 'internal scratch']
  %s0 = inlined_call_operand.vmem [shape: f32[32,64], index: 0, kind: input, shape index: {}]
  %s1 = inlined_call_operand.vmem [shape: f32[512,32], index: 1, kind: input, shape index: {}]
  %s2 = inlined_call_operand.vmem [shape: f32[512,64], index: 2, kind: output, shape index: {}]
  %s3 = sld [smem:[#allocation0]]
  $region18: #{tpu_custom_call.1} parent=0
    _
  %s5 = ssub.s32 1, %s3
  %s6 = scalar_select 0, %s5, %s3
  // Predicated region
  $region2: #{tpu_custom_call.1} parent=0 // pred_check
    _
  $region3: #{tpu_custom_call.1} parent=0 // pred_check_branch
    %8 = sbr.rel (0) target = $region5
  $region4: #{tpu_custom_call.1} parent=0 // pred_region
    _
  $region5: #{tpu_custom_call.1} parent=0 // pred_fallthru
    _
  // Predicated region
  $region6: #{tpu_custom_call.1} parent=0 // pred_check
    _
  $region7: #{tpu_custom_call.1} parent=0 // pred_check_branch
    %10 = sbr.rel (0) target = $region9
  $region8: #{tpu_custom_call.1} parent=0 // pred_region
    _
  $region9: #{tpu_custom_call.1} parent=0 // pred_fallthru
    _
  %v11 = vld [vmem:[%s1] sm:$0xff]
  %v12 = vld [vmem:[%s1 + $0x8] sm:$0xff]
  %v13 = vld [vmem:[%s1 + $0x10] sm:$0xff]
  %v14 = vld [vmem:[%s1 + $0x18] sm:$0xff]
  %v15 = vld [vmem:[%s1 + $0x20] sm:$0xff]
  %v16 = vld [vmem:[%s1 + $0x28] sm:$0xff]
  %v17 = vld [vmem:[%s1 + $0x30] sm:$0xff]
  %v18 = vld [vmem:[%s1 + $0x38] sm:$0xff]
  %v19 = vld [vmem:[%s1 + $0x40] sm:$0xff]
  %v20 = vld [vmem:[%s1 + $0x48] sm:$0xff]
  %v21 = vld [vmem:[%s1 + $0x50] sm:$0xff]
  %v22 = vld [vmem:[%s1 + $0x58] sm:$0xff]
  %v23 = vld [vmem:[%s1 + $0x60] sm:$0xff]
  %v24 = vld [vmem:[%s1 + $0x68] sm:$0xff]
  %v25 = vld [vmem:[%s1 + $0x70] sm:$0xff]
  %v26 = vld [vmem:[%s1 + $0x78] sm:$0xff]
  %v27 = vld [vmem:[%s1 + $0x80] sm:$0xff]
  %v28 = vld [vmem:[%s1 + $0x88] sm:$0xff]
  %v29 = vld [vmem:[%s1 + $0x90] sm:$0xff]
  %v30 = vld [vmem:[%s1 + $0x98] sm:$0xff]
  %v31 = vld [vmem:[%s1 + $0xa0] sm:$0xff]
  %v32 = vld [vmem:[%s1 + $0xa8] sm:$0xff]
  %v33 = vld [vmem:[%s1 + $0xb0] sm:$0xff]
  %v34 = vld [vmem:[%s1 + $0xb8] sm:$0xff]
  %v35 = vld [vmem:[%s1 + $0xc0] sm:$0xff]
  %v36 = vld [vmem:[%s1 + $0xc8] sm:$0xff]
  %v37 = vld [vmem:[%s1 + $0xd0] sm:$0xff]
  %v38 = vld [vmem:[%s1 + $0xd8] sm:$0xff]
  %v39 = vld [vmem:[%s1 + $0xe0] sm:$0xff]
  %v40 = vld [vmem:[%s1 + $0xe8] sm:$0xff]
  %v41 = vld [vmem:[%s1 + $0xf0] sm:$0xff]
  %v42 = vld [vmem:[%s1 + $0xf8] sm:$0xff]
  %v43 = vld [vmem:[%s1 + $0x100] sm:$0xff]
  %v44 = vld [vmem:[%s1 + $0x108] sm:$0xff]
  %v45 = vld [vmem:[%s1 + $0x110] sm:$0xff]
  %v46 = vld [vmem:[%s1 + $0x118] sm:$0xff]
  %v47 = vld [vmem:[%s1 + $0x120] sm:$0xff]
  %v48 = vld [vmem:[%s1 + $0x128] sm:$0xff]
  %v49 = vld [vmem:[%s1 + $0x130] sm:$0xff]
  %v50 = vld [vmem:[%s1 + $0x138] sm:$0xff]
  %v51 = vld [vmem:[%s1 + $0x140] sm:$0xff]
  %v52 = vld [vmem:[%s1 + $0x148] sm:$0xff]
  %v53 = vld [vmem:[%s1 + $0x150] sm:$0xff]
  %v54 = vld [vmem:[%s1 + $0x158] sm:$0xff]
  %v55 = vld [vmem:[%s1 + $0x160] sm:$0xff]
  %v56 = vld [vmem:[%s1 + $0x168] sm:$0xff]
  %v57 = vld [vmem:[%s1 + $0x170] sm:$0xff]
  %v58 = vld [vmem:[%s1 + $0x178] sm:$0xff]
  %v59 = vld [vmem:[%s1 + $0x180] sm:$0xff]
  %v60 = vld [vmem:[%s1 + $0x188] sm:$0xff]
  %v61 = vld [vmem:[%s1 + $0x190] sm:$0xff]
  %v62 = vld [vmem:[%s1 + $0x198] sm:$0xff]
  %v63 = vld [vmem:[%s1 + $0x1a0] sm:$0xff]
  %v64 = vld [vmem:[%s1 + $0x1a8] sm:$0xff]
  %v65 = vld [vmem:[%s1 + $0x1b0] sm:$0xff]
  %v66 = vld [vmem:[%s1 + $0x1b8] sm:$0xff]
  %v67 = vld [vmem:[%s1 + $0x1c0] sm:$0xff]
  %v68 = vld [vmem:[%s1 + $0x1c8] sm:$0xff]
  %v69 = vld [vmem:[%s1 + $0x1d0] sm:$0xff]
  %v70 = vld [vmem:[%s1 + $0x1d8] sm:$0xff]
  %v71 = vld [vmem:[%s1 + $0x1e0] sm:$0xff]
  %v72 = vld [vmem:[%s1 + $0x1e8] sm:$0xff]
  %v73 = vld [vmem:[%s1 + $0x1f0] sm:$0xff]
  %v74 = vld [vmem:[%s1 + $0x1f8] sm:$0xff]
  %v75 = vld [vmem:[%s0] sm:$0xff]
  %v76 = vld [vmem:[%s0 + $0x8] sm:$0xff]
  %v77 = vld [vmem:[%s0 + $0x10] sm:$0xff]
  %v78 = vld [vmem:[%s0 + $0x18] sm:$0xff]
  %vm79 = vcmask 261120
  %v81 = vsel %vm79, %v11, 0
  %v84 = vsel %vm79, %v12, 0
  %v87 = vsel %vm79, %v13, 0
  %v90 = vsel %vm79, %v14, 0
  %v93 = vsel %vm79, %v15, 0
  %v96 = vsel %vm79, %v16, 0
  %v99 = vsel %vm79, %v17, 0
  %v102 = vsel %vm79, %v18, 0
  %v105 = vsel %vm79, %v19, 0
  %v108 = vsel %vm79, %v20, 0
  %v111 = vsel %vm79, %v21, 0
  %v114 = vsel %vm79, %v22, 0
  %v117 = vsel %vm79, %v23, 0
  %v120 = vsel %vm79, %v24, 0
  %v123 = vsel %vm79, %v25, 0
  %v126 = vsel %vm79, %v26, 0
  %v129 = vsel %vm79, %v27, 0
  %v132 = vsel %vm79, %v28, 0
  %v135 = vsel %vm79, %v29, 0
  %v138 = vsel %vm79, %v30, 0
  %v141 = vsel %vm79, %v31, 0
  %v144 = vsel %vm79, %v32, 0
  %v147 = vsel %vm79, %v33, 0
  %v150 = vsel %vm79, %v34, 0
  %v153 = vsel %vm79, %v35, 0
  %v156 = vsel %vm79, %v36, 0
  %v159 = vsel %vm79, %v37, 0
  %v162 = vsel %vm79, %v38, 0
  %v165 = vsel %vm79, %v39, 0
  %v168 = vsel %vm79, %v40, 0
  %v171 = vsel %vm79, %v41, 0
  %v174 = vsel %vm79, %v42, 0
  %v177 = vsel %vm79, %v43, 0
  %v180 = vsel %vm79, %v44, 0
  %v183 = vsel %vm79, %v45, 0
  %v186 = vsel %vm79, %v46, 0
  %v189 = vsel %vm79, %v47, 0
  %v192 = vsel %vm79, %v48, 0
  %v195 = vsel %vm79, %v49, 0
  %v198 = vsel %vm79, %v50, 0
  %v201 = vsel %vm79, %v51, 0
  %v204 = vsel %vm79, %v52, 0
  %v207 = vsel %vm79, %v53, 0
  %v210 = vsel %vm79, %v54, 0
  %v213 = vsel %vm79, %v55, 0
  %v216 = vsel %vm79, %v56, 0
  %v219 = vsel %vm79, %v57, 0
  %v222 = vsel %vm79, %v58, 0
  %v225 = vsel %vm79, %v59, 0
  %v228 = vsel %vm79, %v60, 0
  %v231 = vsel %vm79, %v61, 0
  %v234 = vsel %vm79, %v62, 0
  %v237 = vsel %vm79, %v63, 0
  %v240 = vsel %vm79, %v64, 0
  %v243 = vsel %vm79, %v65, 0
  %v246 = vsel %vm79, %v66, 0
  %v249 = vsel %vm79, %v67, 0
  %v252 = vsel %vm79, %v68, 0
  %v255 = vsel %vm79, %v69, 0
  %v258 = vsel %vm79, %v70, 0
  %v261 = vsel %vm79, %v71, 0
  %v264 = vsel %vm79, %v72, 0
  %v267 = vsel %vm79, %v73, 0
  %v270 = vsel %vm79, %v74, 0
  %272 = vmatprep.subr.mxu0 0.0
  %273 = vmatpush1.msra.mxu0 0.0
  %274 = vmatprep.subr.mxu0 0.0
  %275 = vmatpush1.msra.mxu0 0.0
  %276 = vmatprep.subr.mxu0 0.0
  %277 = vmatpush1.msra.mxu0 0.0
  %278 = vmatprep.subr.mxu0 0.0
  %279 = vmatpush1.msra.mxu0 0.0
  %280 = vmatprep.subr.mxu0 0.0
  %281 = vmatpush1.msra.mxu0 0.0
  %282 = vmatprep.subr.mxu0 0.0
  %283 = vmatpush1.msra.mxu0 0.0
  %284 = vmatprep.subr.mxu0 0.0
  %285 = vmatpush1.msra.mxu0 0.0
  %286 = vmatprep.subr.mxu0 0.0
  %287 = vmatpush1.msra.mxu0 0.0
  %288 = vmatprep.subr.mxu0 0.0
  %289 = vmatpush1.msra.mxu0 0.0
  %290 = vmatprep.subr.mxu0 0.0
  %291 = vmatpush1.msra.mxu0 0.0
  %292 = vmatprep.subr.mxu0 0.0
  %293 = vmatpush1.msra.mxu0 0.0
  %294 = vmatprep.subr.mxu0 0.0
  %295 = vmatpush1.msra.mxu0 0.0
  %296 = vmatprep.subr.mxu0 0.0
  %297 = vmatpush1.msra.mxu0 %v78
  %298 = vmatprep.subr.mxu0 0.0
  %299 = vmatpush1.msra.mxu0 %v77
  %300 = vmatprep.subr.mxu0 0.0
  %301 = vmatpush1.msra.mxu0 %v76
  %302 = vmatprep.subr.mxu0 0.0
  %303 = vmatpush1.msra.mxu0 %v75
  %304 = vmatprep.subr.mxu0 0.0
  %305 = vmatpush2.msra.mxu0 0.0
  %306 = vmatprep.subr.mxu0 0.0
  %307 = vmatpush2.msra.mxu0 0.0
  %308 = vmatprep.subr.mxu0 0.0
  %309 = vmatpush2.msra.mxu0 0.0
  %310 = vmatprep.subr.mxu0 0.0
  %311 = vmatpush2.msra.mxu0 0.0
  %312 = vmatprep.subr.mxu0 0.0
  %313 = vmatpush2.msra.mxu0 0.0
  %314 = vmatprep.subr.mxu0 0.0
  %315 = vmatpush2.msra.mxu0 0.0
  %316 = vmatprep.subr.mxu0 0.0
  %317 = vmatpush2.msra.mxu0 0.0
  %318 = vmatprep.subr.mxu0 0.0
  %319 = vmatpush2.msra.mxu0 0.0
  %320 = vmatprep.subr.mxu0 0.0
  %321 = vmatpush2.msra.mxu0 0.0
  %322 = vmatprep.subr.mxu0 0.0
  %323 = vmatpush2.msra.mxu0 0.0
  %324 = vmatprep.subr.mxu0 0.0
  %325 = vmatpush2.msra.mxu0 0.0
  %326 = vmatprep.subr.mxu0 0.0
  %327 = vmatpush2.msra.mxu0 0.0
  %328 = vmatprep.subr.mxu0 0.0
  %329 = vmatpush2.msra.mxu0 0.0
  %330 = vmatprep.subr.mxu0 0.0
  %331 = vmatpush2.msra.mxu0 0.0
  %332 = vmatprep.subr.mxu0 0.0
  %333 = vmatpush2.msra.mxu0 0.0
  %334 = vmatprep.subr.mxu0 0.0
  %335 = vmatpush2.msra.mxu0 0.0
  %336 = vmatprep.mubr.f32.mxu0 0.0
  %337 = vmatmul.mubr.f32.gmra.mxu0 %v81
  %v338 = vpop.f32.mrf.mxu0
  %v339 = vadd.f32 0.0, %v338
  %v340 = vpop.f32.mrf.mxu0
  %341 = vmatprep.mubr.f32.mxu0 0.0
  %342 = vmatmul.mubr.f32.gmra.mxu0 %v84
  %v343 = vpop.f32.mrf.mxu0
  %v344 = vadd.f32 0.0, %v343
  %v345 = vpop.f32.mrf.mxu0
  %346 = vmatprep.mubr.f32.mxu0 0.0
  %347 = vmatmul.mubr.f32.gmra.mxu0 %v87
  %v348 = vpop.f32.mrf.mxu0
  %v349 = vadd.f32 0.0, %v348
  %v350 = vpop.f32.mrf.mxu0
  %351 = vmatprep.mubr.f32.mxu0 0.0
  %352 = vmatmul.mubr.f32.gmra.mxu0 %v90
  %v353 = vpop.f32.mrf.mxu0
  %v354 = vadd.f32 0.0, %v353
  %v355 = vpop.f32.mrf.mxu0
  %356 = vmatprep.mubr.f32.mxu0 0.0
  %357 = vmatmul.mubr.f32.gmra.mxu0 %v93
  %v358 = vpop.f32.mrf.mxu0
  %v359 = vadd.f32 0.0, %v358
  %v360 = vpop.f32.mrf.mxu0
  %361 = vmatprep.mubr.f32.mxu0 0.0
  %362 = vmatmul.mubr.f32.gmra.mxu0 %v96
  %v363 = vpop.f32.mrf.mxu0
  %v364 = vadd.f32 0.0, %v363
  %v365 = vpop.f32.mrf.mxu0
  %366 = vmatprep.mubr.f32.mxu0 0.0
  %367 = vmatmul.mubr.f32.gmra.mxu0 %v99
  %v368 = vpop.f32.mrf.mxu0
  %v369 = vadd.f32 0.0, %v368
  %v370 = vpop.f32.mrf.mxu0
  %371 = vmatprep.mubr.f32.mxu0 0.0
  %372 = vmatmul.mubr.f32.gmra.mxu0 %v102
  %v373 = vpop.f32.mrf.mxu0
  %v374 = vadd.f32 0.0, %v373
  %v375 = vpop.f32.mrf.mxu0
  %376 = vmatprep.mubr.f32.mxu0 0.0
  %377 = vmatmul.mubr.f32.gmra.mxu0 %v105
  %v378 = vpop.f32.mrf.mxu0
  %v379 = vadd.f32 0.0, %v378
  %v380 = vpop.f32.mrf.mxu0
  %381 = vmatprep.mubr.f32.mxu0 0.0
  %382 = vmatmul.mubr.f32.gmra.mxu0 %v108
  %v383 = vpop.f32.mrf.mxu0
  %v384 = vadd.f32 0.0, %v383
  %v385 = vpop.f32.mrf.mxu0
  %386 = vmatprep.mubr.f32.mxu0 0.0
  %387 = vmatmul.mubr.f32.gmra.mxu0 %v111
  %v388 = vpop.f32.mrf.mxu0
  %v389 = vadd.f32 0.0, %v388
  %v390 = vpop.f32.mrf.mxu0
  %391 = vmatprep.mubr.f32.mxu0 0.0
  %392 = vmatmul.mubr.f32.gmra.mxu0 %v114
  %v393 = vpop.f32.mrf.mxu0
  %v394 = vadd.f32 0.0, %v393
  %v395 = vpop.f32.mrf.mxu0
  %396 = vmatprep.mubr.f32.mxu0 0.0
  %397 = vmatmul.mubr.f32.gmra.mxu0 %v117
  %v398 = vpop.f32.mrf.mxu0
  %v399 = vadd.f32 0.0, %v398
  %v400 = vpop.f32.mrf.mxu0
  %401 = vmatprep.mubr.f32.mxu0 0.0
  %402 = vmatmul.mubr.f32.gmra.mxu0 %v120
  %v403 = vpop.f32.mrf.mxu0
  %v404 = vadd.f32 0.0, %v403
  %v405 = vpop.f32.mrf.mxu0
  %406 = vmatprep.mubr.f32.mxu0 0.0
  %407 = vmatmul.mubr.f32.gmra.mxu0 %v123
  %v408 = vpop.f32.mrf.mxu0
  %v409 = vadd.f32 0.0, %v408
  %v410 = vpop.f32.mrf.mxu0
  %411 = vmatprep.mubr.f32.mxu0 0.0
  %412 = vmatmul.mubr.f32.gmra.mxu0 %v126
  %v413 = vpop.f32.mrf.mxu0
  %v414 = vadd.f32 0.0, %v413
  %v415 = vpop.f32.mrf.mxu0
  %416 = vmatprep.mubr.f32.mxu0 0.0
  %417 = vmatmul.mubr.f32.gmra.mxu0 %v129
  %v418 = vpop.f32.mrf.mxu0
  %v419 = vadd.f32 0.0, %v418
  %v420 = vpop.f32.mrf.mxu0
  %421 = vmatprep.mubr.f32.mxu0 0.0
  %422 = vmatmul.mubr.f32.gmra.mxu0 %v132
  %v423 = vpop.f32.mrf.mxu0
  %v424 = vadd.f32 0.0, %v423
  %v425 = vpop.f32.mrf.mxu0
  %426 = vmatprep.mubr.f32.mxu0 0.0
  %427 = vmatmul.mubr.f32.gmra.mxu0 %v135
  %v428 = vpop.f32.mrf.mxu0
  %v429 = vadd.f32 0.0, %v428
  %v430 = vpop.f32.mrf.mxu0
  %431 = vmatprep.mubr.f32.mxu0 0.0
  %432 = vmatmul.mubr.f32.gmra.mxu0 %v138
  %v433 = vpop.f32.mrf.mxu0
  %v434 = vadd.f32 0.0, %v433
  %v435 = vpop.f32.mrf.mxu0
  %436 = vmatprep.mubr.f32.mxu0 0.0
  %437 = vmatmul.mubr.f32.gmra.mxu0 %v141
  %v438 = vpop.f32.mrf.mxu0
  %v439 = vadd.f32 0.0, %v438
  %v440 = vpop.f32.mrf.mxu0
  %441 = vmatprep.mubr.f32.mxu0 0.0
  %442 = vmatmul.mubr.f32.gmra.mxu0 %v144
  %v443 = vpop.f32.mrf.mxu0
  %v444 = vadd.f32 0.0, %v443
  %v445 = vpop.f32.mrf.mxu0
  %446 = vmatprep.mubr.f32.mxu0 0.0
  %447 = vmatmul.mubr.f32.gmra.mxu0 %v147
  %v448 = vpop.f32.mrf.mxu0
  %v449 = vadd.f32 0.0, %v448
  %v450 = vpop.f32.mrf.mxu0
  %451 = vmatprep.mubr.f32.mxu0 0.0
  %452 = vmatmul.mubr.f32.gmra.mxu0 %v150
  %v453 = vpop.f32.mrf.mxu0
  %v454 = vadd.f32 0.0, %v453
  %v455 = vpop.f32.mrf.mxu0
  %456 = vmatprep.mubr.f32.mxu0 0.0
  %457 = vmatmul.mubr.f32.gmra.mxu0 %v153
  %v458 = vpop.f32.mrf.mxu0
  %v459 = vadd.f32 0.0, %v458
  %v460 = vpop.f32.mrf.mxu0
  %461 = vmatprep.mubr.f32.mxu0 0.0
  %462 = vmatmul.mubr.f32.gmra.mxu0 %v156
  %v463 = vpop.f32.mrf.mxu0
  %v464 = vadd.f32 0.0, %v463
  %v465 = vpop.f32.mrf.mxu0
  %466 = vmatprep.mubr.f32.mxu0 0.0
  %467 = vmatmul.mubr.f32.gmra.mxu0 %v159
  %v468 = vpop.f32.mrf.mxu0
  %v469 = vadd.f32 0.0, %v468
  %v470 = vpop.f32.mrf.mxu0
  %471 = vmatprep.mubr.f32.mxu0 0.0
  %472 = vmatmul.mubr.f32.gmra.mxu0 %v162
  %v473 = vpop.f32.mrf.mxu0
  %v474 = vadd.f32 0.0, %v473
  %v475 = vpop.f32.mrf.mxu0
  %476 = vmatprep.mubr.f32.mxu0 0.0
  %477 = vmatmul.mubr.f32.gmra.mxu0 %v165
  %v478 = vpop.f32.mrf.mxu0
  %v479 = vadd.f32 0.0, %v478
  %v480 = vpop.f32.mrf.mxu0
  %481 = vmatprep.mubr.f32.mxu0 0.0
  %482 = vmatmul.mubr.f32.gmra.mxu0 %v168
  %v483 = vpop.f32.mrf.mxu0
  %v484 = vadd.f32 0.0, %v483
  %v485 = vpop.f32.mrf.mxu0
  %486 = vmatprep.mubr.f32.mxu0 0.0
  %487 = vmatmul.mubr.f32.gmra.mxu0 %v171
  %v488 = vpop.f32.mrf.mxu0
  %v489 = vadd.f32 0.0, %v488
  %v490 = vpop.f32.mrf.mxu0
  %491 = vmatprep.mubr.f32.mxu0 0.0
  %492 = vmatmul.mubr.f32.gmra.mxu0 %v174
  %v493 = vpop.f32.mrf.mxu0
  %v494 = vadd.f32 0.0, %v493
  %v495 = vpop.f32.mrf.mxu0
  %496 = vmatprep.mubr.f32.mxu0 0.0
  %497 = vmatmul.mubr.f32.gmra.mxu0 %v177
  %v498 = vpop.f32.mrf.mxu0
  %v499 = vadd.f32 0.0, %v498
  %v500 = vpop.f32.mrf.mxu0
  %501 = vmatprep.mubr.f32.mxu0 0.0
  %502 = vmatmul.mubr.f32.gmra.mxu0 %v180
  %v503 = vpop.f32.mrf.mxu0
  %v504 = vadd.f32 0.0, %v503
  %v505 = vpop.f32.mrf.mxu0
  %506 = vmatprep.mubr.f32.mxu0 0.0
  %507 = vmatmul.mubr.f32.gmra.mxu0 %v183
  %v508 = vpop.f32.mrf.mxu0
  %v509 = vadd.f32 0.0, %v508
  %v510 = vpop.f32.mrf.mxu0
  %511 = vmatprep.mubr.f32.mxu0 0.0
  %512 = vmatmul.mubr.f32.gmra.mxu0 %v186
  %v513 = vpop.f32.mrf.mxu0
  %v514 = vadd.f32 0.0, %v513
  %v515 = vpop.f32.mrf.mxu0
  %516 = vmatprep.mubr.f32.mxu0 0.0
  %517 = vmatmul.mubr.f32.gmra.mxu0 %v189
  %v518 = vpop.f32.mrf.mxu0
  %v519 = vadd.f32 0.0, %v518
  %v520 = vpop.f32.mrf.mxu0
  %521 = vmatprep.mubr.f32.mxu0 0.0
  %522 = vmatmul.mubr.f32.gmra.mxu0 %v192
  %v523 = vpop.f32.mrf.mxu0
  %v524 = vadd.f32 0.0, %v523
  %v525 = vpop.f32.mrf.mxu0
  %526 = vmatprep.mubr.f32.mxu0 0.0
  %527 = vmatmul.mubr.f32.gmra.mxu0 %v195
  %v528 = vpop.f32.mrf.mxu0
  %v529 = vadd.f32 0.0, %v528
  %v530 = vpop.f32.mrf.mxu0
  %531 = vmatprep.mubr.f32.mxu0 0.0
  %532 = vmatmul.mubr.f32.gmra.mxu0 %v198
  %v533 = vpop.f32.mrf.mxu0
  %v534 = vadd.f32 0.0, %v533
  %v535 = vpop.f32.mrf.mxu0
  %536 = vmatprep.mubr.f32.mxu0 0.0
  %537 = vmatmul.mubr.f32.gmra.mxu0 %v201
  %v538 = vpop.f32.mrf.mxu0
  %v539 = vadd.f32 0.0, %v538
  %v540 = vpop.f32.mrf.mxu0
  %541 = vmatprep.mubr.f32.mxu0 0.0
  %542 = vmatmul.mubr.f32.gmra.mxu0 %v204
  %v543 = vpop.f32.mrf.mxu0
  %v544 = vadd.f32 0.0, %v543
  %v545 = vpop.f32.mrf.mxu0
  %546 = vmatprep.mubr.f32.mxu0 0.0
  %547 = vmatmul.mubr.f32.gmra.mxu0 %v207
  %v548 = vpop.f32.mrf.mxu0
  %v549 = vadd.f32 0.0, %v548
  %v550 = vpop.f32.mrf.mxu0
  %551 = vmatprep.mubr.f32.mxu0 0.0
  %552 = vmatmul.mubr.f32.gmra.mxu0 %v210
  %v553 = vpop.f32.mrf.mxu0
  %v554 = vadd.f32 0.0, %v553
  %v555 = vpop.f32.mrf.mxu0
  %556 = vmatprep.mubr.f32.mxu0 0.0
  %557 = vmatmul.mubr.f32.gmra.mxu0 %v213
  %v558 = vpop.f32.mrf.mxu0
  %v559 = vadd.f32 0.0, %v558
  %v560 = vpop.f32.mrf.mxu0
  %561 = vmatprep.mubr.f32.mxu0 0.0
  %562 = vmatmul.mubr.f32.gmra.mxu0 %v216
  %v563 = vpop.f32.mrf.mxu0
  %v564 = vadd.f32 0.0, %v563
  %v565 = vpop.f32.mrf.mxu0
  %566 = vmatprep.mubr.f32.mxu0 0.0
  %567 = vmatmul.mubr.f32.gmra.mxu0 %v219
  %v568 = vpop.f32.mrf.mxu0
  %v569 = vadd.f32 0.0, %v568
  %v570 = vpop.f32.mrf.mxu0
  %571 = vmatprep.mubr.f32.mxu0 0.0
  %572 = vmatmul.mubr.f32.gmra.mxu0 %v222
  %v573 = vpop.f32.mrf.mxu0
  %v574 = vadd.f32 0.0, %v573
  %v575 = vpop.f32.mrf.mxu0
  %576 = vmatprep.mubr.f32.mxu0 0.0
  %577 = vmatmul.mubr.f32.gmra.mxu0 %v225
  %v578 = vpop.f32.mrf.mxu0
  %v579 = vadd.f32 0.0, %v578
  %v580 = vpop.f32.mrf.mxu0
  %581 = vmatprep.mubr.f32.mxu0 0.0
  %582 = vmatmul.mubr.f32.gmra.mxu0 %v228
  %v583 = vpop.f32.mrf.mxu0
  %v584 = vadd.f32 0.0, %v583
  %v585 = vpop.f32.mrf.mxu0
  %586 = vmatprep.mubr.f32.mxu0 0.0
  %587 = vmatmul.mubr.f32.gmra.mxu0 %v231
  %v588 = vpop.f32.mrf.mxu0
  %v589 = vadd.f32 0.0, %v588
  %v590 = vpop.f32.mrf.mxu0
  %591 = vmatprep.mubr.f32.mxu0 0.0
  %592 = vmatmul.mubr.f32.gmra.mxu0 %v234
  %v593 = vpop.f32.mrf.mxu0
  %v594 = vadd.f32 0.0, %v593
  %v595 = vpop.f32.mrf.mxu0
  %596 = vmatprep.mubr.f32.mxu0 0.0
  %597 = vmatmul.mubr.f32.gmra.mxu0 %v237
  %v598 = vpop.f32.mrf.mxu0
  %v599 = vadd.f32 0.0, %v598
  %v600 = vpop.f32.mrf.mxu0
  %601 = vmatprep.mubr.f32.mxu0 0.0
  %602 = vmatmul.mubr.f32.gmra.mxu0 %v240
  %v603 = vpop.f32.mrf.mxu0
  %v604 = vadd.f32 0.0, %v603
  %v605 = vpop.f32.mrf.mxu0
  %606 = vmatprep.mubr.f32.mxu0 0.0
  %607 = vmatmul.mubr.f32.gmra.mxu0 %v243
  %v608 = vpop.f32.mrf.mxu0
  %v609 = vadd.f32 0.0, %v608
  %v610 = vpop.f32.mrf.mxu0
  %611 = vmatprep.mubr.f32.mxu0 0.0
  %612 = vmatmul.mubr.f32.gmra.mxu0 %v246
  %v613 = vpop.f32.mrf.mxu0
  %v614 = vadd.f32 0.0, %v613
  %v615 = vpop.f32.mrf.mxu0
  %616 = vmatprep.mubr.f32.mxu0 0.0
  %617 = vmatmul.mubr.f32.gmra.mxu0 %v249
  %v618 = vpop.f32.mrf.mxu0
  %v619 = vadd.f32 0.0, %v618
  %v620 = vpop.f32.mrf.mxu0
  %621 = vmatprep.mubr.f32.mxu0 0.0
  %622 = vmatmul.mubr.f32.gmra.mxu0 %v252
  %v623 = vpop.f32.mrf.mxu0
  %v624 = vadd.f32 0.0, %v623
  %v625 = vpop.f32.mrf.mxu0
  %626 = vmatprep.mubr.f32.mxu0 0.0
  %627 = vmatmul.mubr.f32.gmra.mxu0 %v255
  %v628 = vpop.f32.mrf.mxu0
  %v629 = vadd.f32 0.0, %v628
  %v630 = vpop.f32.mrf.mxu0
  %631 = vmatprep.mubr.f32.mxu0 0.0
  %632 = vmatmul.mubr.f32.gmra.mxu0 %v258
  %v633 = vpop.f32.mrf.mxu0
  %v634 = vadd.f32 0.0, %v633
  %v635 = vpop.f32.mrf.mxu0
  %636 = vmatprep.mubr.f32.mxu0 0.0
  %637 = vmatmul.mubr.f32.gmra.mxu0 %v261
  %v638 = vpop.f32.mrf.mxu0
  %v639 = vadd.f32 0.0, %v638
  %v640 = vpop.f32.mrf.mxu0
  %641 = vmatprep.mubr.f32.mxu0 0.0
  %642 = vmatmul.mubr.f32.gmra.mxu0 %v264
  %v643 = vpop.f32.mrf.mxu0
  %v644 = vadd.f32 0.0, %v643
  %v645 = vpop.f32.mrf.mxu0
  %646 = vmatprep.mubr.f32.mxu0 0.0
  %647 = vmatmul.mubr.f32.gmra.mxu0 %v267
  %v648 = vpop.f32.mrf.mxu0
  %v649 = vadd.f32 0.0, %v648
  %v650 = vpop.f32.mrf.mxu0
  %651 = vmatprep.mubr.f32.mxu0 0.0
  %652 = vmatmul.mubr.f32.gmra.mxu0 %v270
  %v653 = vpop.f32.mrf.mxu0
  %v654 = vadd.f32 0.0, %v653
  %v655 = vpop.f32.mrf.mxu0
  %656 = vdwg.mxu0
  %vm657 = vcmask 523264
  %658 = vst.msk [vmem:[%s2] sm:$0xff] %vm657, %v339
  %659 = vst.msk [vmem:[%s2 + $0x8] sm:$0xff] %vm657, %v344
  %660 = vst.msk [vmem:[%s2 + $0x10] sm:$0xff] %vm657, %v349
  %661 = vst.msk [vmem:[%s2 + $0x18] sm:$0xff] %vm657, %v354
  %662 = vst.msk [vmem:[%s2 + $0x20] sm:$0xff] %vm657, %v359
  %663 = vst.msk [vmem:[%s2 + $0x28] sm:$0xff] %vm657, %v364
  %664 = vst.msk [vmem:[%s2 + $0x30] sm:$0xff] %vm657, %v369
  %665 = vst.msk [vmem:[%s2 + $0x38] sm:$0xff] %vm657, %v374
  %666 = vst.msk [vmem:[%s2 + $0x40] sm:$0xff] %vm657, %v379
  %667 = vst.msk [vmem:[%s2 + $0x48] sm:$0xff] %vm657, %v384
  %668 = vst.msk [vmem:[%s2 + $0x50] sm:$0xff] %vm657, %v389
  %669 = vst.msk [vmem:[%s2 + $0x58] sm:$0xff] %vm657, %v394
  %670 = vst.msk [vmem:[%s2 + $0x60] sm:$0xff] %vm657, %v399
  %671 = vst.msk [vmem:[%s2 + $0x68] sm:$0xff] %vm657, %v404
  %672 = vst.msk [vmem:[%s2 + $0x70] sm:$0xff] %vm657, %v409
  %673 = vst.msk [vmem:[%s2 + $0x78] sm:$0xff] %vm657, %v414
  %674 = vst.msk [vmem:[%s2 + $0x80] sm:$0xff] %vm657, %v419
  %675 = vst.msk [vmem:[%s2 + $0x88] sm:$0xff] %vm657, %v424
  %676 = vst.msk [vmem:[%s2 + $0x90] sm:$0xff] %vm657, %v429
  %677 = vst.msk [vmem:[%s2 + $0x98] sm:$0xff] %vm657, %v434
  %678 = vst.msk [vmem:[%s2 + $0xa0] sm:$0xff] %vm657, %v439
  %679 = vst.msk [vmem:[%s2 + $0xa8] sm:$0xff] %vm657, %v444
  %680 = vst.msk [vmem:[%s2 + $0xb0] sm:$0xff] %vm657, %v449
  %681 = vst.msk [vmem:[%s2 + $0xb8] sm:$0xff] %vm657, %v454
  %682 = vst.msk [vmem:[%s2 + $0xc0] sm:$0xff] %vm657, %v459
  %683 = vst.msk [vmem:[%s2 + $0xc8] sm:$0xff] %vm657, %v464
  %684 = vst.msk [vmem:[%s2 + $0xd0] sm:$0xff] %vm657, %v469
  %685 = vst.msk [vmem:[%s2 + $0xd8] sm:$0xff] %vm657, %v474
  %686 = vst.msk [vmem:[%s2 + $0xe0] sm:$0xff] %vm657, %v479
  %687 = vst.msk [vmem:[%s2 + $0xe8] sm:$0xff] %vm657, %v484
  %688 = vst.msk [vmem:[%s2 + $0xf0] sm:$0xff] %vm657, %v489
  %689 = vst.msk [vmem:[%s2 + $0xf8] sm:$0xff] %vm657, %v494
  %690 = vst.msk [vmem:[%s2 + $0x100] sm:$0xff] %vm657, %v499
  %691 = vst.msk [vmem:[%s2 + $0x108] sm:$0xff] %vm657, %v504
  %692 = vst.msk [vmem:[%s2 + $0x110] sm:$0xff] %vm657, %v509
  %693 = vst.msk [vmem:[%s2 + $0x118] sm:$0xff] %vm657, %v514
  %694 = vst.msk [vmem:[%s2 + $0x120] sm:$0xff] %vm657, %v519
  %695 = vst.msk [vmem:[%s2 + $0x128] sm:$0xff] %vm657, %v524
  %696 = vst.msk [vmem:[%s2 + $0x130] sm:$0xff] %vm657, %v529
  %697 = vst.msk [vmem:[%s2 + $0x138] sm:$0xff] %vm657, %v534
  %698 = vst.msk [vmem:[%s2 + $0x140] sm:$0xff] %vm657, %v539
  %699 = vst.msk [vmem:[%s2 + $0x148] sm:$0xff] %vm657, %v544
  %700 = vst.msk [vmem:[%s2 + $0x150] sm:$0xff] %vm657, %v549
  %701 = vst.msk [vmem:[%s2 + $0x158] sm:$0xff] %vm657, %v554
  %702 = vst.msk [vmem:[%s2 + $0x160] sm:$0xff] %vm657, %v559
  %703 = vst.msk [vmem:[%s2 + $0x168] sm:$0xff] %vm657, %v564
  %704 = vst.msk [vmem:[%s2 + $0x170] sm:$0xff] %vm657, %v569
  %705 = vst.msk [vmem:[%s2 + $0x178] sm:$0xff] %vm657, %v574
  %706 = vst.msk [vmem:[%s2 + $0x180] sm:$0xff] %vm657, %v579
  %707 = vst.msk [vmem:[%s2 + $0x188] sm:$0xff] %vm657, %v584
  %708 = vst.msk [vmem:[%s2 + $0x190] sm:$0xff] %vm657, %v589
  %709 = vst.msk [vmem:[%s2 + $0x198] sm:$0xff] %vm657, %v594
  %710 = vst.msk [vmem:[%s2 + $0x1a0] sm:$0xff] %vm657, %v599
  %711 = vst.msk [vmem:[%s2 + $0x1a8] sm:$0xff] %vm657, %v604
  %712 = vst.msk [vmem:[%s2 + $0x1b0] sm:$0xff] %vm657, %v609
  %713 = vst.msk [vmem:[%s2 + $0x1b8] sm:$0xff] %vm657, %v614
  %714 = vst.msk [vmem:[%s2 + $0x1c0] sm:$0xff] %vm657, %v619
  %715 = vst.msk [vmem:[%s2 + $0x1c8] sm:$0xff] %vm657, %v624
  %716 = vst.msk [vmem:[%s2 + $0x1d0] sm:$0xff] %vm657, %v629
  %717 = vst.msk [vmem:[%s2 + $0x1d8] sm:$0xff] %vm657, %v634
  %718 = vst.msk [vmem:[%s2 + $0x1e0] sm:$0xff] %vm657, %v639
  %719 = vst.msk [vmem:[%s2 + $0x1e8] sm:$0xff] %vm657, %v644
  %720 = vst.msk [vmem:[%s2 + $0x1f0] sm:$0xff] %vm657, %v649
  %721 = vst.msk [vmem:[%s2 + $0x1f8] sm:$0xff] %vm657, %v654
  // Predicated region
  $region10: #{tpu_custom_call.1} parent=0 // pred_check
    _
  $region11: #{tpu_custom_call.1} parent=0 // pred_check_branch
    %723 = sbr.rel (0) target = $region13
  $region12: #{tpu_custom_call.1} parent=0 // pred_region
    _
  $region13: #{tpu_custom_call.1} parent=0 // pred_fallthru
    _
  // Predicated region
  $region14: #{tpu_custom_call.1} parent=0 // pred_check
    _
  $region15: #{tpu_custom_call.1} parent=0 // pred_check_branch
    %725 = sbr.rel (0) target = $region17
  $region16: #{tpu_custom_call.1} parent=0 // pred_region
    _
  $region17: #{tpu_custom_call.1} parent=0 // pred_fallthru
    _

</llo_original>
